<compile_context>
chip_gen: v7x
topology: tpu7x:2x2x1
jax: 0.10.0
libtpu: 0.0.40
codegen_flags: <defaults>
</compile_context>

<pallas_src>
import functools

import jax
import jax.numpy as jnp
from jax.experimental import pallas as pl
from jax.experimental.pallas import tpu as pltpu


def _round_up(x, m):
    return ((x + m - 1) // m) * m


# -----------------------------------------------------------------------------
# Fused kernel: (block-diag) encode -> per-modality layernorm -> MLP classifier
# Operates on "packed" rows: `pack` logical frames per physical row, so the
# lane dimension is pack * 2 * last_dim (a multiple of 128 when possible).
# -----------------------------------------------------------------------------
def fakenet_kernel(vid_ref, aud_ref,                  # (Rp, pack*Dv), (Rp, pack*Da) f32
                   wv_ref, wa_ref, benc_ref,          # packed encoder weights / bias
                   w1_ref, b1_ref, w2_ref, b2_ref,    # packed MLP (LN affine folded in w1/b1)
                   cls_ref,                           # (Rp, pack*2D) bf16 out
                   *, last_dim, pack):
    f32 = jnp.float32
    bf16 = jnp.bfloat16

    # ---- fused stand-in encoders: one dot per modality -> packed (v‖a) rows
    vid = vid_ref[...].astype(bf16)
    aud = aud_ref[...].astype(bf16)
    h = (jnp.dot(vid, wv_ref[...], preferred_element_type=f32)
         + jnp.dot(aud, wa_ref[...], preferred_element_type=f32)
         + benc_ref[...])                              # (Rp, pack*2D) f32

    # ---- normalized == 'layernorm' per modality (eps=1e-5, affine folded) --
    # Lane layout per packed row: [v a v a ...], each segment `last_dim` wide.
    lane = jax.lax.broadcasted_iota(jnp.int32, h.shape, 1)
    hsq = h * h
    inv_n = 1.0 / last_dim
    mu = jnp.zeros_like(h)
    rstd = jnp.zeros_like(h)
    for s in range(2 * pack):
        m = (lane >= s * last_dim) & (lane < (s + 1) * last_dim)
        s_sum = jnp.sum(jnp.where(m, h, 0.0), axis=-1, keepdims=True)
        s_sq = jnp.sum(jnp.where(m, hsq, 0.0), axis=-1, keepdims=True)
        mu_s = s_sum * inv_n
        var_s = jnp.maximum(s_sq * inv_n - mu_s * mu_s, 0.0)   # clamp: no NaN
        mu = jnp.where(m, mu_s, mu)
        rstd = jnp.where(m, jax.lax.rsqrt(var_s + 1e-5), rstd)
    feats = ((h - mu) * rstd).astype(bf16)

    # ---- MLP temporal classifier (Dropout = eval no-op), bf16 on the MXU ---
    h1 = jnp.maximum(
        jnp.dot(feats, w1_ref[...], preferred_element_type=f32) + b1_ref[...], 0.0)
    h2 = jnp.maximum(
        jnp.dot(h1.astype(bf16), w2_ref[...], preferred_element_type=f32)
        + b2_ref[...], 0.0)

    cls_ref[...] = h2.astype(cls_ref.dtype)            # lane-dense bf16 store


# -----------------------------------------------------------------------------
# Tiling chooser (packed-row units)
# -----------------------------------------------------------------------------
def _choose_tiling(rows_p, target_p):
    """Return (tile_p, rows_padded_p)."""
    if rows_p < 32:
        return rows_p, rows_p                      # tiny: one full-dim tile
    if rows_p % 16 and rows_p <= target_p:
        return rows_p, rows_p                      # one tile; avoids a pad copy
    rows_pp = _round_up(rows_p, 16)
    # keep grid >= 2 so the 'parallel' axis can shard across v7x's two TCs
    cap = min(target_p, _round_up((rows_pp + 1) // 2, 16))
    cap = max(16, cap - cap % 16)
    tile = 16
    for t in range(cap, 15, -16):
        if rows_pp % t == 0:
            tile = t
            break
    if tile < 256 and rows_pp > 1024:
        # awkward divisors: pad a bit more to get reasonably large tiles
        rows_pp = _round_up(rows_p, 1024)
        for t in range(cap, 15, -16):
            if rows_pp % t == 0:
                tile = t
                break
    return tile, rows_pp


# -----------------------------------------------------------------------------
# Wrapper
# -----------------------------------------------------------------------------
@functools.partial(jax.jit, static_argnames=("row_tile",))
def fakenet_forward(vid, aud, y, params, *, row_tile=4096):
    """vid: (B, T, Dv_in), aud: (B, T, Da_in), y: (B, num_classes) float targets."""
    B, T, Dv_in = vid.shape
    _, _, Da_in = aud.shape
    last_dim = params["wv"].shape[1]
    two_d = 2 * last_dim
    num_classes = params["w3"].shape[1]
    rows = B * T

    f32 = jnp.float32
    bf16 = jnp.bfloat16

    # Row-pair packing factor: pack consecutive frames per physical row so the
    # kernel's lane dimension is a dense multiple of 128.
    pack = 128 // two_d if (two_d < 128 and 128 % two_d == 0) else 1
    while pack > 1 and rows % pack:
        pack //= 2
    lanes = pack * two_d
    rows_p = rows // pack

    target_p = max(16, _round_up(max(row_tile // pack, 1), 16))
    tile_p, rows_pp = _choose_tiling(rows_p, target_p)

    # ---- inputs: free reshapes only (no concat / cast / pad HBM pass) ------
    vid_p = vid.reshape(rows_p, pack * Dv_in)
    aud_p = aud.reshape(rows_p, pack * Da_in)
    if rows_pp > rows_p:                   # rare: only if rows_p awkward & large
        vid_p = jnp.pad(vid_p, ((0, rows_pp - rows_p), (0, 0)))
        aud_p = jnp.pad(aud_p, ((0, rows_pp - rows_p), (0, 0)))

    # ---- host-side weight fusion (tiny, O(two_d^2)) -------------------------
    eye = jnp.eye(pack, dtype=f32)

    wv_ext = jnp.zeros((Dv_in, two_d), f32).at[:, :last_dim].set(params["wv"])
    wa_ext = jnp.zeros((Da_in, two_d), f32).at[:, last_dim:].set(params["wa"])
    wv_p = jnp.kron(eye, wv_ext).astype(bf16)           # (pack*Dv_in, lanes)
    wa_p = jnp.kron(eye, wa_ext).astype(bf16)           # (pack*Da_in, lanes)
    b_enc = jnp.concatenate([params["bv"], params["ba"]], axis=-1)
    b_enc_p = jnp.tile(b_enc, (1, pack))                 # (1, lanes) f32

    # fold the LayerNorm affine (gamma, beta) into w1/b1
    gamma_cat = jnp.concatenate([params["gv"], params["ga"]], axis=-1)
    beta_cat = jnp.concatenate([params["betav"], params["betaa"]], axis=-1)
    w1f = gamma_cat.reshape(two_d, 1) * params["w1"]
    b1f = params["b1"] + beta_cat @ params["w1"]
    w1_p = jnp.kron(eye, w1f).astype(bf16)
    b1_p = jnp.tile(b1f, (1, pack))
    w2_p = jnp.kron(eye, params["w2"]).astype(bf16)
    b2_p = jnp.tile(params["b2"], (1, pack))

    weights = [wv_p, wa_p, b_enc_p, w1_p, b1_p, w2_p, b2_p]

    grid = (rows_pp // tile_p,)
    row_map = lambda i: (i, 0)
    full_map = lambda i: (0, 0)

    kernel = functools.partial(fakenet_kernel, last_dim=last_dim, pack=pack)

    cls_dense = pl.pallas_call(
        kernel,
        out_shape=jax.ShapeDtypeStruct((rows_pp, lanes), bf16),
        grid_spec=pltpu.PrefetchScalarGridSpec(
            num_scalar_prefetch=0,
            grid=grid,
            in_specs=[
                pl.BlockSpec((tile_p, pack * Dv_in), row_map),
                pl.BlockSpec((tile_p, pack * Da_in), row_map),
                *[pl.BlockSpec(w.shape, full_map) for w in weights],
            ],
            out_specs=pl.BlockSpec((tile_p, lanes), row_map),
        ),
        compiler_params=pltpu.CompilerParams(
            dimension_semantics=("parallel",),
            vmem_limit_bytes=48 * 1024 * 1024),
    )(vid_p, aud_p, *weights)

    if rows_pp > rows_p:
        cls_dense = cls_dense[:rows_p]

    # (rows_p, pack*two_d) has the exact row-major flat layout of (rows, two_d),
    # so this reshape back to per-frame features is a free bitcast.
    cls = cls_dense.reshape(B, T, two_d)                 # bf16 penultimate feats

    # Glue: the final linear layer commutes with the temporal mean, so compute
    # clip-level logits from the pooled penultimate feature (tiny matmul).
    # TODO(synk): real model uses a TemporalTransformer for temporal aggregation.
    pooled = cls.astype(f32).mean(axis=1)                # (B, two_d)
    logits = pooled @ params["w3"] + params["b3"]        # (B, num_classes)

    output = {
        "logits": logits,
        "cls": cls,                                      # bf16 (dominant stream)
    }

    # BCEWithLogitsLoss (num_classes == 1), mean reduction — plain-JAX glue.
    z = logits
    yf = y.astype(f32)
    bce = jnp.mean(jnp.maximum(z, 0.0) - z * yf + jnp.log1p(jnp.exp(-jnp.abs(z))))
    output["BCE"] = bce[None]
    return output


# -----------------------------------------------------------------------------
# Deterministic parameter construction
# -----------------------------------------------------------------------------
def make_params(key, dv_in, da_in, last_dim, num_classes=1):
    two_d = 2 * last_dim
    ks = jax.random.split(key, 8)

    def lin(k, fan_in, fan_out):
        scale = 1.0 / jnp.sqrt(fan_in)
        return (jax.random.uniform(k, (fan_in, fan_out), jnp.float32, -scale, scale),
                jnp.zeros((1, fan_out), jnp.float32))

    wv, bv = lin(ks[0], dv_in, last_dim)
    wa, ba = lin(ks[1], da_in, last_dim)
    w1, b1 = lin(ks[2], two_d, two_d)
    w2, b2 = lin(ks[3], two_d, two_d)
    w3, b3 = lin(ks[4], two_d, num_classes)
    return {
        "wv": wv, "bv": bv, "wa": wa, "ba": ba,
        "gv": jnp.ones((1, last_dim), jnp.float32),
        "betav": jnp.zeros((1, last_dim), jnp.float32),
        "ga": jnp.ones((1, last_dim), jnp.float32),
        "betaa": jnp.zeros((1, last_dim), jnp.float32),
        "w1": w1, "b1": b1, "w2": w2, "b2": b2, "w3": w3, "b3": b3,
    }


if __name__ == "__main__":
    B, T = 2, 8            # batch, frames_per_clip
    DV_IN, DA_IN = 48, 40  # per-frame visual / audio (mfcc) feature dims
    LAST_DIM = 32
    NUM_CLASSES = 1

    key = jax.random.PRNGKey(0)
    k_vid, k_aud, k_y, k_par = jax.random.split(key, 4)

    vid = jax.random.normal(k_vid, (B, T, DV_IN), jnp.float32)
    aud = jax.random.normal(k_aud, (B, T, DA_IN), jnp.float32)
    y = (jax.random.uniform(k_y, (B, NUM_CLASSES)) > 0.5).astype(jnp.float32)

    params = make_params(k_par, DV_IN, DA_IN, LAST_DIM, NUM_CLASSES)

    out = fakenet_forward(vid, aud, y, params)
    jax.block_until_ready(out)

    assert out["logits"].shape == (B, NUM_CLASSES)
    assert out["cls"].shape == (B, T, 2 * LAST_DIM)
    assert out["BCE"].shape == (1,)
    assert jnp.isfinite(out["BCE"]).all()
    assert jnp.isfinite(out["logits"]).all()
    assert jnp.isfinite(out["cls"].astype(jnp.float32)).all()
    print("KERNEL_OK")
</pallas_src>

<mosaic_0001>
module attributes {stable_mosaic.version = 11 : i64} {
  func.func @fakenet_kernel(%arg0: i32, %arg1: memref<8x96xf32, #tpu.memory_space<vmem>>, %arg2: memref<8x80xf32, #tpu.memory_space<vmem>>, %arg3: memref<96x128xbf16, #tpu.memory_space<vmem>>, %arg4: memref<80x128xbf16, #tpu.memory_space<vmem>>, %arg5: memref<1x128xf32, #tpu.memory_space<vmem>>, %arg6: memref<128x128xbf16, #tpu.memory_space<vmem>>, %arg7: memref<1x128xf32, #tpu.memory_space<vmem>>, %arg8: memref<128x128xbf16, #tpu.memory_space<vmem>>, %arg9: memref<1x128xf32, #tpu.memory_space<vmem>>, %arg10: memref<8x128xbf16, #tpu.memory_space<vmem>>) attributes {dimension_semantics = [#tpu.dimension_semantics<parallel>], iteration_bounds = array<i64: 1>, scalar_prefetch = 0 : i64, scratch_operands = 0 : i64, tpu.core_type = #tpu.core_type<tc>, window_params = [{transform_indices = @transform_0, window_bounds = array<i64: 8, 96>}, {transform_indices = @transform_1, window_bounds = array<i64: 8, 80>}, {pipeline_mode = #tpu.pipeline_mode<synchronous>, transform_indices = @transform_2, window_bounds = array<i64: 96, 128>}, {pipeline_mode = #tpu.pipeline_mode<synchronous>, transform_indices = @transform_3, window_bounds = array<i64: 80, 128>}, {pipeline_mode = #tpu.pipeline_mode<synchronous>, transform_indices = @transform_4, window_bounds = array<i64: 1, 128>}, {pipeline_mode = #tpu.pipeline_mode<synchronous>, transform_indices = @transform_5, window_bounds = array<i64: 128, 128>}, {pipeline_mode = #tpu.pipeline_mode<synchronous>, transform_indices = @transform_6, window_bounds = array<i64: 1, 128>}, {pipeline_mode = #tpu.pipeline_mode<synchronous>, transform_indices = @transform_7, window_bounds = array<i64: 128, 128>}, {pipeline_mode = #tpu.pipeline_mode<synchronous>, transform_indices = @transform_8, window_bounds = array<i64: 1, 128>}, {transform_indices = @transform_9, window_bounds = array<i64: 8, 128>}]} {
    %c0 = arith.constant 0 : index
    %c0_0 = arith.constant 0 : index
    %0 = vector.load %arg1[%c0, %c0_0] : memref<8x96xf32, #tpu.memory_space<vmem>>, vector<8x96xf32>
    %1 = arith.truncf %0 : vector<8x96xf32> to vector<8x96xbf16>
    %c0_1 = arith.constant 0 : index
    %c0_2 = arith.constant 0 : index
    %2 = vector.load %arg2[%c0_1, %c0_2] : memref<8x80xf32, #tpu.memory_space<vmem>>, vector<8x80xf32>
    %3 = arith.truncf %2 : vector<8x80xf32> to vector<8x80xbf16>
    %c0_3 = arith.constant 0 : index
    %c0_4 = arith.constant 0 : index
    %4 = vector.load %arg3[%c0_3, %c0_4] : memref<96x128xbf16, #tpu.memory_space<vmem>>, vector<96x128xbf16>
    %cst = arith.constant dense<0.000000e+00> : vector<8x128xf32>
    %5 = tpu.matmul %1, %4, %cst {dimension_numbers = #tpu.dot_dimension_numbers<[1], [0], [0], [1], [0, 0, 1, 1], [], []>} : vector<8x96xbf16>, vector<96x128xbf16>, vector<8x128xf32> -> vector<8x128xf32>
    %c0_5 = arith.constant 0 : index
    %c0_6 = arith.constant 0 : index
    %6 = vector.load %arg4[%c0_5, %c0_6] : memref<80x128xbf16, #tpu.memory_space<vmem>>, vector<80x128xbf16>
    %cst_7 = arith.constant dense<0.000000e+00> : vector<8x128xf32>
    %7 = tpu.matmul %3, %6, %cst_7 {dimension_numbers = #tpu.dot_dimension_numbers<[1], [0], [0], [1], [0, 0, 1, 1], [], []>} : vector<8x80xbf16>, vector<80x128xbf16>, vector<8x128xf32> -> vector<8x128xf32>
    %8 = arith.addf %5, %7 : vector<8x128xf32>
    %c0_8 = arith.constant 0 : index
    %c0_9 = arith.constant 0 : index
    %9 = vector.load %arg5[%c0_8, %c0_9] : memref<1x128xf32, #tpu.memory_space<vmem>>, vector<1x128xf32>
    %10 = vector.broadcast %9 : vector<1x128xf32> to vector<8x128xf32>
    %11 = arith.addf %8, %10 : vector<8x128xf32>
    %12 = tpu.iota {dimensions = array<i32: 1>} : vector<8x128xi32>
    %13 = arith.mulf %11, %11 : vector<8x128xf32>
    %cst_10 = arith.constant 0.000000e+00 : f32
    %14 = vector.broadcast %cst_10 : f32 to vector<8x128xf32>
    %cst_11 = arith.constant 0.000000e+00 : f32
    %15 = vector.broadcast %cst_11 : f32 to vector<8x128xf32>
    %c0_i32 = arith.constant 0 : i32
    %16 = vector.broadcast %c0_i32 : i32 to vector<8x128xi32>
    %17 = arith.cmpi sge, %12, %16 : vector<8x128xi32>
    %c32_i32 = arith.constant 32 : i32
    %18 = vector.broadcast %c32_i32 : i32 to vector<8x128xi32>
    %19 = arith.cmpi slt, %12, %18 : vector<8x128xi32>
    %20 = arith.andi %17, %19 : vector<8x128xi1>
    %cst_12 = arith.constant 0.000000e+00 : f32
    %21 = vector.broadcast %cst_12 : f32 to vector<8x128xf32>
    %22 = arith.select %20, %11, %21 : vector<8x128xi1>, vector<8x128xf32>
    %cst_13 = arith.constant dense<0.000000e+00> : vector<8xf32>
    %23 = vector.multi_reduction <add>, %22, %cst_13 [1] : vector<8x128xf32> to vector<8xf32>
    %24 = vector.shape_cast %23 : vector<8xf32> to vector<8x1xf32>
    %cst_14 = arith.constant 0.000000e+00 : f32
    %25 = vector.broadcast %cst_14 : f32 to vector<8x128xf32>
    %26 = arith.select %20, %13, %25 : vector<8x128xi1>, vector<8x128xf32>
    %cst_15 = arith.constant dense<0.000000e+00> : vector<8xf32>
    %27 = vector.multi_reduction <add>, %26, %cst_15 [1] : vector<8x128xf32> to vector<8xf32>
    %28 = vector.shape_cast %27 : vector<8xf32> to vector<8x1xf32>
    %cst_16 = arith.constant 3.125000e-02 : f32
    %29 = vector.broadcast %cst_16 : f32 to vector<8x1xf32>
    %30 = arith.mulf %24, %29 : vector<8x1xf32>
    %cst_17 = arith.constant 3.125000e-02 : f32
    %31 = vector.broadcast %cst_17 : f32 to vector<8x1xf32>
    %32 = arith.mulf %28, %31 : vector<8x1xf32>
    %33 = arith.mulf %30, %30 : vector<8x1xf32>
    %34 = arith.subf %32, %33 : vector<8x1xf32>
    %cst_18 = arith.constant 0.000000e+00 : f32
    %35 = vector.broadcast %cst_18 : f32 to vector<8x1xf32>
    %36 = arith.maximumf %34, %35 : vector<8x1xf32>
    %37 = vector.shape_cast %30 : vector<8x1xf32> to vector<8x1xf32>
    %38 = vector.broadcast %37 : vector<8x1xf32> to vector<8x128xf32>
    %39 = arith.select %20, %38, %14 : vector<8x128xi1>, vector<8x128xf32>
    %cst_19 = arith.constant 9.99999974E-6 : f32
    %40 = vector.broadcast %cst_19 : f32 to vector<8x1xf32>
    %41 = arith.addf %36, %40 : vector<8x1xf32>
    %42 = math.rsqrt %41 : vector<8x1xf32>
    %43 = vector.shape_cast %42 : vector<8x1xf32> to vector<8x1xf32>
    %44 = vector.broadcast %43 : vector<8x1xf32> to vector<8x128xf32>
    %45 = arith.select %20, %44, %15 : vector<8x128xi1>, vector<8x128xf32>
    %c32_i32_20 = arith.constant 32 : i32
    %46 = vector.broadcast %c32_i32_20 : i32 to vector<8x128xi32>
    %47 = arith.cmpi sge, %12, %46 : vector<8x128xi32>
    %c64_i32 = arith.constant 64 : i32
    %48 = vector.broadcast %c64_i32 : i32 to vector<8x128xi32>
    %49 = arith.cmpi slt, %12, %48 : vector<8x128xi32>
    %50 = arith.andi %47, %49 : vector<8x128xi1>
    %cst_21 = arith.constant 0.000000e+00 : f32
    %51 = vector.broadcast %cst_21 : f32 to vector<8x128xf32>
    %52 = arith.select %50, %11, %51 : vector<8x128xi1>, vector<8x128xf32>
    %cst_22 = arith.constant dense<0.000000e+00> : vector<8xf32>
    %53 = vector.multi_reduction <add>, %52, %cst_22 [1] : vector<8x128xf32> to vector<8xf32>
    %54 = vector.shape_cast %53 : vector<8xf32> to vector<8x1xf32>
    %cst_23 = arith.constant 0.000000e+00 : f32
    %55 = vector.broadcast %cst_23 : f32 to vector<8x128xf32>
    %56 = arith.select %50, %13, %55 : vector<8x128xi1>, vector<8x128xf32>
    %cst_24 = arith.constant dense<0.000000e+00> : vector<8xf32>
    %57 = vector.multi_reduction <add>, %56, %cst_24 [1] : vector<8x128xf32> to vector<8xf32>
    %58 = vector.shape_cast %57 : vector<8xf32> to vector<8x1xf32>
    %cst_25 = arith.constant 3.125000e-02 : f32
    %59 = vector.broadcast %cst_25 : f32 to vector<8x1xf32>
    %60 = arith.mulf %54, %59 : vector<8x1xf32>
    %cst_26 = arith.constant 3.125000e-02 : f32
    %61 = vector.broadcast %cst_26 : f32 to vector<8x1xf32>
    %62 = arith.mulf %58, %61 : vector<8x1xf32>
    %63 = arith.mulf %60, %60 : vector<8x1xf32>
    %64 = arith.subf %62, %63 : vector<8x1xf32>
    %cst_27 = arith.constant 0.000000e+00 : f32
    %65 = vector.broadcast %cst_27 : f32 to vector<8x1xf32>
    %66 = arith.maximumf %64, %65 : vector<8x1xf32>
    %67 = vector.shape_cast %60 : vector<8x1xf32> to vector<8x1xf32>
    %68 = vector.broadcast %67 : vector<8x1xf32> to vector<8x128xf32>
    %69 = arith.select %50, %68, %39 : vector<8x128xi1>, vector<8x128xf32>
    %cst_28 = arith.constant 9.99999974E-6 : f32
    %70 = vector.broadcast %cst_28 : f32 to vector<8x1xf32>
    %71 = arith.addf %66, %70 : vector<8x1xf32>
    %72 = math.rsqrt %71 : vector<8x1xf32>
    %73 = vector.shape_cast %72 : vector<8x1xf32> to vector<8x1xf32>
    %74 = vector.broadcast %73 : vector<8x1xf32> to vector<8x128xf32>
    %75 = arith.select %50, %74, %45 : vector<8x128xi1>, vector<8x128xf32>
    %c64_i32_29 = arith.constant 64 : i32
    %76 = vector.broadcast %c64_i32_29 : i32 to vector<8x128xi32>
    %77 = arith.cmpi sge, %12, %76 : vector<8x128xi32>
    %c96_i32 = arith.constant 96 : i32
    %78 = vector.broadcast %c96_i32 : i32 to vector<8x128xi32>
    %79 = arith.cmpi slt, %12, %78 : vector<8x128xi32>
    %80 = arith.andi %77, %79 : vector<8x128xi1>
    %cst_30 = arith.constant 0.000000e+00 : f32
    %81 = vector.broadcast %cst_30 : f32 to vector<8x128xf32>
    %82 = arith.select %80, %11, %81 : vector<8x128xi1>, vector<8x128xf32>
    %cst_31 = arith.constant dense<0.000000e+00> : vector<8xf32>
    %83 = vector.multi_reduction <add>, %82, %cst_31 [1] : vector<8x128xf32> to vector<8xf32>
    %84 = vector.shape_cast %83 : vector<8xf32> to vector<8x1xf32>
    %cst_32 = arith.constant 0.000000e+00 : f32
    %85 = vector.broadcast %cst_32 : f32 to vector<8x128xf32>
    %86 = arith.select %80, %13, %85 : vector<8x128xi1>, vector<8x128xf32>
    %cst_33 = arith.constant dense<0.000000e+00> : vector<8xf32>
    %87 = vector.multi_reduction <add>, %86, %cst_33 [1] : vector<8x128xf32> to vector<8xf32>
    %88 = vector.shape_cast %87 : vector<8xf32> to vector<8x1xf32>
    %cst_34 = arith.constant 3.125000e-02 : f32
    %89 = vector.broadcast %cst_34 : f32 to vector<8x1xf32>
    %90 = arith.mulf %84, %89 : vector<8x1xf32>
    %cst_35 = arith.constant 3.125000e-02 : f32
    %91 = vector.broadcast %cst_35 : f32 to vector<8x1xf32>
    %92 = arith.mulf %88, %91 : vector<8x1xf32>
    %93 = arith.mulf %90, %90 : vector<8x1xf32>
    %94 = arith.subf %92, %93 : vector<8x1xf32>
    %cst_36 = arith.constant 0.000000e+00 : f32
    %95 = vector.broadcast %cst_36 : f32 to vector<8x1xf32>
    %96 = arith.maximumf %94, %95 : vector<8x1xf32>
    %97 = vector.shape_cast %90 : vector<8x1xf32> to vector<8x1xf32>
    %98 = vector.broadcast %97 : vector<8x1xf32> to vector<8x128xf32>
    %99 = arith.select %80, %98, %69 : vector<8x128xi1>, vector<8x128xf32>
    %cst_37 = arith.constant 9.99999974E-6 : f32
    %100 = vector.broadcast %cst_37 : f32 to vector<8x1xf32>
    %101 = arith.addf %96, %100 : vector<8x1xf32>
    %102 = math.rsqrt %101 : vector<8x1xf32>
    %103 = vector.shape_cast %102 : vector<8x1xf32> to vector<8x1xf32>
    %104 = vector.broadcast %103 : vector<8x1xf32> to vector<8x128xf32>
    %105 = arith.select %80, %104, %75 : vector<8x128xi1>, vector<8x128xf32>
    %c96_i32_38 = arith.constant 96 : i32
    %106 = vector.broadcast %c96_i32_38 : i32 to vector<8x128xi32>
    %107 = arith.cmpi sge, %12, %106 : vector<8x128xi32>
    %c128_i32 = arith.constant 128 : i32
    %108 = vector.broadcast %c128_i32 : i32 to vector<8x128xi32>
    %109 = arith.cmpi slt, %12, %108 : vector<8x128xi32>
    %110 = arith.andi %107, %109 : vector<8x128xi1>
    %cst_39 = arith.constant 0.000000e+00 : f32
    %111 = vector.broadcast %cst_39 : f32 to vector<8x128xf32>
    %112 = arith.select %110, %11, %111 : vector<8x128xi1>, vector<8x128xf32>
    %cst_40 = arith.constant dense<0.000000e+00> : vector<8xf32>
    %113 = vector.multi_reduction <add>, %112, %cst_40 [1] : vector<8x128xf32> to vector<8xf32>
    %114 = vector.shape_cast %113 : vector<8xf32> to vector<8x1xf32>
    %cst_41 = arith.constant 0.000000e+00 : f32
    %115 = vector.broadcast %cst_41 : f32 to vector<8x128xf32>
    %116 = arith.select %110, %13, %115 : vector<8x128xi1>, vector<8x128xf32>
    %cst_42 = arith.constant dense<0.000000e+00> : vector<8xf32>
    %117 = vector.multi_reduction <add>, %116, %cst_42 [1] : vector<8x128xf32> to vector<8xf32>
    %118 = vector.shape_cast %117 : vector<8xf32> to vector<8x1xf32>
    %cst_43 = arith.constant 3.125000e-02 : f32
    %119 = vector.broadcast %cst_43 : f32 to vector<8x1xf32>
    %120 = arith.mulf %114, %119 : vector<8x1xf32>
    %cst_44 = arith.constant 3.125000e-02 : f32
    %121 = vector.broadcast %cst_44 : f32 to vector<8x1xf32>
    %122 = arith.mulf %118, %121 : vector<8x1xf32>
    %123 = arith.mulf %120, %120 : vector<8x1xf32>
    %124 = arith.subf %122, %123 : vector<8x1xf32>
    %cst_45 = arith.constant 0.000000e+00 : f32
    %125 = vector.broadcast %cst_45 : f32 to vector<8x1xf32>
    %126 = arith.maximumf %124, %125 : vector<8x1xf32>
    %127 = vector.shape_cast %120 : vector<8x1xf32> to vector<8x1xf32>
    %128 = vector.broadcast %127 : vector<8x1xf32> to vector<8x128xf32>
    %129 = arith.select %110, %128, %99 : vector<8x128xi1>, vector<8x128xf32>
    %cst_46 = arith.constant 9.99999974E-6 : f32
    %130 = vector.broadcast %cst_46 : f32 to vector<8x1xf32>
    %131 = arith.addf %126, %130 : vector<8x1xf32>
    %132 = math.rsqrt %131 : vector<8x1xf32>
    %133 = vector.shape_cast %132 : vector<8x1xf32> to vector<8x1xf32>
    %134 = vector.broadcast %133 : vector<8x1xf32> to vector<8x128xf32>
    %135 = arith.select %110, %134, %105 : vector<8x128xi1>, vector<8x128xf32>
    %136 = arith.subf %11, %129 : vector<8x128xf32>
    %137 = arith.mulf %136, %135 : vector<8x128xf32>
    %138 = arith.truncf %137 : vector<8x128xf32> to vector<8x128xbf16>
    %c0_47 = arith.constant 0 : index
    %c0_48 = arith.constant 0 : index
    %139 = vector.load %arg6[%c0_47, %c0_48] : memref<128x128xbf16, #tpu.memory_space<vmem>>, vector<128x128xbf16>
    %cst_49 = arith.constant dense<0.000000e+00> : vector<8x128xf32>
    %140 = tpu.matmul %138, %139, %cst_49 {dimension_numbers = #tpu.dot_dimension_numbers<[1], [0], [0], [1], [0, 0, 1, 1], [], []>} : vector<8x128xbf16>, vector<128x128xbf16>, vector<8x128xf32> -> vector<8x128xf32>
    %c0_50 = arith.constant 0 : index
    %c0_51 = arith.constant 0 : index
    %141 = vector.load %arg7[%c0_50, %c0_51] : memref<1x128xf32, #tpu.memory_space<vmem>>, vector<1x128xf32>
    %142 = vector.broadcast %141 : vector<1x128xf32> to vector<8x128xf32>
    %143 = arith.addf %140, %142 : vector<8x128xf32>
    %cst_52 = arith.constant 0.000000e+00 : f32
    %144 = vector.broadcast %cst_52 : f32 to vector<8x128xf32>
    %145 = arith.maximumf %143, %144 : vector<8x128xf32>
    %146 = arith.truncf %145 : vector<8x128xf32> to vector<8x128xbf16>
    %c0_53 = arith.constant 0 : index
    %c0_54 = arith.constant 0 : index
    %147 = vector.load %arg8[%c0_53, %c0_54] : memref<128x128xbf16, #tpu.memory_space<vmem>>, vector<128x128xbf16>
    %cst_55 = arith.constant dense<0.000000e+00> : vector<8x128xf32>
    %148 = tpu.matmul %146, %147, %cst_55 {dimension_numbers = #tpu.dot_dimension_numbers<[1], [0], [0], [1], [0, 0, 1, 1], [], []>} : vector<8x128xbf16>, vector<128x128xbf16>, vector<8x128xf32> -> vector<8x128xf32>
    %c0_56 = arith.constant 0 : index
    %c0_57 = arith.constant 0 : index
    %149 = vector.load %arg9[%c0_56, %c0_57] : memref<1x128xf32, #tpu.memory_space<vmem>>, vector<1x128xf32>
    %150 = vector.broadcast %149 : vector<1x128xf32> to vector<8x128xf32>
    %151 = arith.addf %148, %150 : vector<8x128xf32>
    %cst_58 = arith.constant 0.000000e+00 : f32
    %152 = vector.broadcast %cst_58 : f32 to vector<8x128xf32>
    %153 = arith.maximumf %151, %152 : vector<8x128xf32>
    %154 = arith.truncf %153 : vector<8x128xf32> to vector<8x128xbf16>
    %c0_59 = arith.constant 0 : index
    %c0_60 = arith.constant 0 : index
    %155 = vector.load %arg10[%c0_59, %c0_60] : memref<8x128xbf16, #tpu.memory_space<vmem>>, vector<8x128xbf16>
    tpu.vector_store %arg10[%c0_59, %c0_60], %154 {strides = array<i32>} : memref<8x128xbf16, #tpu.memory_space<vmem>>, vector<8x128xbf16>,
    return
  }
  func.func @transform_0(%arg0: i32) -> (i32, i32) {
    %c0_i32 = arith.constant 0 : i32
    %c0_i32_0 = arith.constant 0 : i32
    return %arg0, %c0_i32 : i32, i32
  }
  func.func @transform_1(%arg0: i32) -> (i32, i32) {
    %c0_i32 = arith.constant 0 : i32
    %c0_i32_0 = arith.constant 0 : i32
    return %arg0, %c0_i32 : i32, i32
  }
  func.func @transform_2(%arg0: i32) -> (i32, i32) {
    %c0_i32 = arith.constant 0 : i32
    %c0_i32_0 = arith.constant 0 : i32
    %c0_i32_1 = arith.constant 0 : i32
    return %c0_i32, %c0_i32_0 : i32, i32
  }
  func.func @transform_3(%arg0: i32) -> (i32, i32) {
    %c0_i32 = arith.constant 0 : i32
    %c0_i32_0 = arith.constant 0 : i32
    %c0_i32_1 = arith.constant 0 : i32
    return %c0_i32, %c0_i32_0 : i32, i32
  }
  func.func @transform_4(%arg0: i32) -> (i32, i32) {
    %c0_i32 = arith.constant 0 : i32
    %c0_i32_0 = arith.constant 0 : i32
    %c0_i32_1 = arith.constant 0 : i32
    return %c0_i32, %c0_i32_0 : i32, i32
  }
  func.func @transform_5(%arg0: i32) -> (i32, i32) {
    %c0_i32 = arith.constant 0 : i32
    %c0_i32_0 = arith.constant 0 : i32
    %c0_i32_1 = arith.constant 0 : i32
    return %c0_i32, %c0_i32_0 : i32, i32
  }
  func.func @transform_6(%arg0: i32) -> (i32, i32) {
    %c0_i32 = arith.constant 0 : i32
    %c0_i32_0 = arith.constant 0 : i32
    %c0_i32_1 = arith.constant 0 : i32
    return %c0_i32, %c0_i32_0 : i32, i32
  }
  func.func @transform_7(%arg0: i32) -> (i32, i32) {
    %c0_i32 = arith.constant 0 : i32
    %c0_i32_0 = arith.constant 0 : i32
    %c0_i32_1 = arith.constant 0 : i32
    return %c0_i32, %c0_i32_0 : i32, i32
  }
  func.func @transform_8(%arg0: i32) -> (i32, i32) {
    %c0_i32 = arith.constant 0 : i32
    %c0_i32_0 = arith.constant 0 : i32
    %c0_i32_1 = arith.constant 0 : i32
    return %c0_i32, %c0_i32_0 : i32, i32
  }
  func.func @transform_9(%arg0: i32) -> (i32, i32) {
    %c0_i32 = arith.constant 0 : i32
    %c0_i32_0 = arith.constant 0 : i32
    return %arg0, %c0_i32 : i32, i32
  }
}

</mosaic_0001>

<llo_original>
// kernel: fakenet_forward.1
$region0: #{fakenet_forward.1}
  #allocation0 [shape = 'u32[]', space=smem, size = 0x4, offset = 0x4, fixed_abs, tag = 'smem constant byte address 0x4 - core index']
  #allocation1 [shape = 'u32[144,128]{1,0:T(1,128)}', space=vmem, size = 0x12000, scoped, tag = 'internal scratch']
  %s0 = inlined_call_operand.vmem [shape: f32[8,96], index: 0, kind: input, shape index: {}]
  %s1 = inlined_call_operand.vmem [shape: f32[8,80], index: 1, kind: input, shape index: {}]
  %s2 = inlined_call_operand.vmem [shape: bf16[96,128], index: 2, kind: input, shape index: {}]
  %s3 = inlined_call_operand.vmem [shape: bf16[80,128], index: 3, kind: input, shape index: {}]
  %s4 = inlined_call_operand.vmem [shape: f32[1,128], index: 4, kind: input, shape index: {}]
  %s5 = inlined_call_operand.vmem [shape: bf16[128,128], index: 5, kind: input, shape index: {}]
  %s6 = inlined_call_operand.vmem [shape: f32[1,128], index: 6, kind: input, shape index: {}]
  %s7 = inlined_call_operand.vmem [shape: bf16[128,128], index: 7, kind: input, shape index: {}]
  %s8 = inlined_call_operand.vmem [shape: f32[1,128], index: 8, kind: input, shape index: {}]
  %s9 = inlined_call_operand.vmem [shape: bf16[8,128], index: 9, kind: output, shape index: {}]
  %s10 = sld [smem:[#allocation0]]
  $region46: #{fakenet_forward.1} parent=0
    _
  %s12 = ssub.s32 1, %s10
  %s13 = scalar_select 0, %s12, %s10
  // Predicated region
  $region2: #{fakenet_forward.1} parent=0 // pred_check
    _
  $region3: #{fakenet_forward.1} parent=0 // pred_check_branch
    %15 = sbr.rel (0) target = $region5
  $region4: #{fakenet_forward.1} parent=0 // pred_region
    _
  $region5: #{fakenet_forward.1} parent=0 // pred_fallthru
    _
  // Predicated region
  $region6: #{fakenet_forward.1} parent=0 // pred_check
    _
  $region7: #{fakenet_forward.1} parent=0 // pred_check_branch
    %17 = sbr.rel (0) target = $region9
  $region8: #{fakenet_forward.1} parent=0 // pred_region
    _
  $region9: #{fakenet_forward.1} parent=0 // pred_fallthru
    _
  // Predicated region
  $region10: #{fakenet_forward.1} parent=0 // pred_check
    _
  $region11: #{fakenet_forward.1} parent=0 // pred_check_branch
    %19 = sbr.rel (0) target = $region13
  $region12: #{fakenet_forward.1} parent=0 // pred_region
    _
  $region13: #{fakenet_forward.1} parent=0 // pred_fallthru
    _
  // Predicated region
  $region14: #{fakenet_forward.1} parent=0 // pred_check
    _
  $region15: #{fakenet_forward.1} parent=0 // pred_check_branch
    %21 = sbr.rel (0) target = $region17
  $region16: #{fakenet_forward.1} parent=0 // pred_region
    _
  $region17: #{fakenet_forward.1} parent=0 // pred_fallthru
    _
  // Predicated region
  $region18: #{fakenet_forward.1} parent=0 // pred_check
    _
  $region19: #{fakenet_forward.1} parent=0 // pred_check_branch
    %23 = sbr.rel (0) target = $region21
  $region20: #{fakenet_forward.1} parent=0 // pred_region
    _
  $region21: #{fakenet_forward.1} parent=0 // pred_fallthru
    _
  // Predicated region
  $region22: #{fakenet_forward.1} parent=0 // pred_check
    _
  $region23: #{fakenet_forward.1} parent=0 // pred_check_branch
    %25 = sbr.rel (0) target = $region25
  $region24: #{fakenet_forward.1} parent=0 // pred_region
    _
  $region25: #{fakenet_forward.1} parent=0 // pred_fallthru
    _
  // Predicated region
  $region26: #{fakenet_forward.1} parent=0 // pred_check
    _
  $region27: #{fakenet_forward.1} parent=0 // pred_check_branch
    %27 = sbr.rel (0) target = $region29
  $region28: #{fakenet_forward.1} parent=0 // pred_region
    _
  $region29: #{fakenet_forward.1} parent=0 // pred_fallthru
    _
  // Predicated region
  $region30: #{fakenet_forward.1} parent=0 // pred_check
    _
  $region31: #{fakenet_forward.1} parent=0 // pred_check_branch
    %29 = sbr.rel (0) target = $region33
  $region32: #{fakenet_forward.1} parent=0 // pred_region
    _
  $region33: #{fakenet_forward.1} parent=0 // pred_fallthru
    _
  // Predicated region
  $region34: #{fakenet_forward.1} parent=0 // pred_check
    _
  $region35: #{fakenet_forward.1} parent=0 // pred_check_branch
    %31 = sbr.rel (0) target = $region37
  $region36: #{fakenet_forward.1} parent=0 // pred_region
    _
  $region37: #{fakenet_forward.1} parent=0 // pred_fallthru
    _
  %v33 = vld [vmem:[%s0] sm:$0xff]
  %v34 = vpack.c.bf16 %v33, %v33
  %v35 = vld [vmem:[%s1] sm:$0xff]
  %v36 = vpack.c.bf16 %v35, %v35
  %v37 = vld [vmem:[%s2] sm:$0xf]
  %v38 = vld [vmem:[%s2 + $0x4] sm:$0xf]
  %v39 = vld [vmem:[%s2 + $0x8] sm:$0xf]
  %v40 = vld [vmem:[%s2 + $0xc] sm:$0xf]
  %v41 = vld [vmem:[%s2 + $0x10] sm:$0xf]
  %v42 = vld [vmem:[%s2 + $0x14] sm:$0xf]
  %v43 = vld [vmem:[%s2 + $0x18] sm:$0xf]
  %v44 = vld [vmem:[%s2 + $0x1c] sm:$0xf]
  %v45 = vld [vmem:[%s2 + $0x20] sm:$0xf]
  %v46 = vld [vmem:[%s2 + $0x24] sm:$0xf]
  %v47 = vld [vmem:[%s2 + $0x28] sm:$0xf]
  %v48 = vld [vmem:[%s2 + $0x2c] sm:$0xf]
  %v49 = vld [vmem:[%s3] sm:$0xf]
  %v50 = vld [vmem:[%s3 + $0x4] sm:$0xf]
  %v51 = vld [vmem:[%s3 + $0x8] sm:$0xf]
  %v52 = vld [vmem:[%s3 + $0xc] sm:$0xf]
  %v53 = vld [vmem:[%s3 + $0x10] sm:$0xf]
  %v54 = vld [vmem:[%s3 + $0x14] sm:$0xf]
  %v55 = vld [vmem:[%s3 + $0x18] sm:$0xf]
  %v56 = vld [vmem:[%s3 + $0x1c] sm:$0xf]
  %v57 = vld [vmem:[%s3 + $0x20] sm:$0xf]
  %v58 = vld [vmem:[%s3 + $0x24] sm:$0xf]
  %v69 = vunpack.c.l.b16 %v49
  %v70 = vunpack.c.l.b16 %v50
  %v71 = vunpack.c.l.b16 %v51
  %v72 = vunpack.c.l.b16 %v52
  %v73 = vunpack.c.l.b16 %v53
  %v74 = vunpack.c.l.b16 %v54
  %v75 = vunpack.c.l.b16 %v55
  %v76 = vunpack.c.l.b16 %v56
  %v77 = vunpack.c.l.b16 %v57
  %v78 = vunpack.c.l.b16 %v58
  %v79 = vpack.c.b16 %v70, %v69
  %v80 = vpack.c.b16 %v72, %v71
  %v81 = vpack.c.b16 %v74, %v73
  %v82 = vpack.c.b16 %v76, %v75
  %v83 = vpack.c.b16 %v78, %v77
  %vm89 = vcmask 654336
  %v91 = vsel %vm89, %v36, 0
  %93 = vmatprep.subr.bf16.mxu0 0
  %94 = vmatpush1.bf16.msra.mxu0 %v79
  %95 = vmatprep.subr.bf16.mxu0 0
  %96 = vmatpush1.bf16.msra.mxu0 %v80
  %97 = vmatprep.subr.bf16.mxu0 0
  %98 = vmatpush1.bf16.msra.mxu0 %v81
  %99 = vmatprep.subr.bf16.mxu0 0
  %100 = vmatpush1.bf16.msra.mxu0 %v82
  %101 = vmatprep.subr.bf16.mxu0 0
  %102 = vmatpush1.bf16.msra.mxu0 %v83
  %103 = vmatprep.subr.bf16.mxu0 0
  %104 = vmatpush1.bf16.msra.mxu0 0
  %105 = vmatprep.subr.bf16.mxu0 0
  %106 = vmatpush1.bf16.msra.mxu0 0
  %107 = vmatprep.subr.bf16.mxu0 0
  %108 = vmatpush1.bf16.msra.mxu0 0
  %109 = vmatprep.subr.bf16.mxu0 0
  %110 = vmatpush1.bf16.msra.mxu0 0
  %111 = vmatprep.subr.bf16.mxu0 0
  %112 = vmatpush1.bf16.msra.mxu0 0
  %113 = vmatprep.subr.bf16.mxu0 0
  %114 = vmatpush1.bf16.msra.mxu0 0
  %115 = vmatprep.subr.bf16.mxu0 0
  %116 = vmatpush1.bf16.msra.mxu0 0
  %117 = vmatprep.subr.bf16.mxu0 0
  %118 = vmatpush1.bf16.msra.mxu0 0
  %119 = vmatprep.subr.bf16.mxu0 0
  %120 = vmatpush1.bf16.msra.mxu0 0
  %121 = vmatprep.subr.bf16.mxu0 0
  %122 = vmatpush1.bf16.msra.mxu0 0
  %123 = vmatprep.subr.bf16.mxu0 0
  %124 = vmatpush1.bf16.msra.mxu0 0
  %125 = vmatprep.mubr.bf16.mxu0 0
  %126 = vmatmul.mubr.bf16.gmra.mrb[0].mxu0 %v91
  %v127 = vpop.f32.mrb[0].mxu0
  %v128 = vadd.f32 0.0, %v127
  %v129 = vpop.f32.mrb[0].mxu0
  %v130 = vpop.f32.mrb[0].mxu0
  %v131 = vpop.f32.mrb[0].mxu0
  %132 = vdwg.mxu0
  %v145 = vunpack.c.l.b16 %v37
  %v146 = vunpack.c.l.b16 %v38
  %v147 = vunpack.c.l.b16 %v39
  %v148 = vunpack.c.l.b16 %v40
  %v149 = vunpack.c.l.b16 %v41
  %v150 = vunpack.c.l.b16 %v42
  %v151 = vunpack.c.l.b16 %v43
  %v152 = vunpack.c.l.b16 %v44
  %v153 = vunpack.c.l.b16 %v45
  %v154 = vunpack.c.l.b16 %v46
  %v155 = vunpack.c.l.b16 %v47
  %v156 = vunpack.c.l.b16 %v48
  %v157 = vpack.c.b16 %v146, %v145
  %v158 = vpack.c.b16 %v148, %v147
  %v159 = vpack.c.b16 %v150, %v149
  %v160 = vpack.c.b16 %v152, %v151
  %v161 = vpack.c.b16 %v154, %v153
  %v162 = vpack.c.b16 %v156, %v155
  %vm169 = vcmask 785408
  %v171 = vsel %vm169, %v34, 0
  %173 = vmatprep.subr.bf16.mxu0 0
  %174 = vmatpush1.bf16.msra.mxu0 %v157
  %175 = vmatprep.subr.bf16.mxu0 0
  %176 = vmatpush1.bf16.msra.mxu0 %v158
  %177 = vmatprep.subr.bf16.mxu0 0
  %178 = vmatpush1.bf16.msra.mxu0 %v159
  %179 = vmatprep.subr.bf16.mxu0 0
  %180 = vmatpush1.bf16.msra.mxu0 %v160
  %181 = vmatprep.subr.bf16.mxu0 0
  %182 = vmatpush1.bf16.msra.mxu0 %v161
  %183 = vmatprep.subr.bf16.mxu0 0
  %184 = vmatpush1.bf16.msra.mxu0 %v162
  %185 = vmatprep.subr.bf16.mxu0 0
  %186 = vmatpush1.bf16.msra.mxu0 0
  %187 = vmatprep.subr.bf16.mxu0 0
  %188 = vmatpush1.bf16.msra.mxu0 0
  %189 = vmatprep.subr.bf16.mxu0 0
  %190 = vmatpush1.bf16.msra.mxu0 0
  %191 = vmatprep.subr.bf16.mxu0 0
  %192 = vmatpush1.bf16.msra.mxu0 0
  %193 = vmatprep.subr.bf16.mxu0 0
  %194 = vmatpush1.bf16.msra.mxu0 0
  %195 = vmatprep.subr.bf16.mxu0 0
  %196 = vmatpush1.bf16.msra.mxu0 0
  %197 = vmatprep.subr.bf16.mxu0 0
  %198 = vmatpush1.bf16.msra.mxu0 0
  %199 = vmatprep.subr.bf16.mxu0 0
  %200 = vmatpush1.bf16.msra.mxu0 0
  %201 = vmatprep.subr.bf16.mxu0 0
  %202 = vmatpush1.bf16.msra.mxu0 0
  %203 = vmatprep.subr.bf16.mxu0 0
  %204 = vmatpush1.bf16.msra.mxu0 0
  %205 = vmatprep.mubr.bf16.mxu0 0
  %206 = vmatmul.mubr.bf16.gmra.mrb[0].mxu0 %v171
  %v207 = vpop.f32.mrb[0].mxu0
  %v208 = vadd.f32 %v128, %v207
  %v209 = vpop.f32.mrb[0].mxu0
  %v210 = vpop.f32.mrb[0].mxu0
  %v211 = vpop.f32.mrb[0].mxu0
  %212 = vdwg.mxu0
  %v213 = vld [vmem:[%s4] sm:$0x1]
  %v215 = vlaneseq
  %v216 = vshrl.u32 %v215, 7
  %v217 = vsub.s32 0, %v216
  %v218 = vrot.slane %v213, %v217
  %v220 = vadd.f32 %v208, %v218
  %v221 = vlaneseq
  %v222 = vand.u32 %v221, 127
  %v223 = vmul.f32 %v220, %v220
  %vm224 = vcmp.ge.s32.totalorder %v222, 0
  %vm225 = vcmp.lt.s32.totalorder %v222, 32
  %vm226 = vmand %vm224, %vm225
  %v227 = vsel %vm226, %v220, 0.0
  %228 = vadd.xlane.f32.xlu0 %v227
  %v229 = vpop.xlane.xlu0 %228
  %v230 = vsel %vm226, %v223, 0.0
  %231 = vadd.xlane.f32.xlu0 %v230
  %v232 = vpop.xlane.xlu0 %231
  %v233 = vmul.f32 %v229, 0.03125
  %v234 = vmul.f32 %v232, 0.03125
  %v235 = vmul.f32 %v233, %v233
  %v236 = vsub.f32 %v234, %v235
  %v237 = vmax.f32 %v236, 0.0
  %v238 = vsel %vm226, %v233, 0.0
  %v239 = vadd.f32 %v237, 1e-05
  %v240 = vrsqrt.pop %v239
  %v241 = vsel %vm226, %v240, 0.0
  %vm242 = vcmp.ge.s32.totalorder %v222, 32
  %vm243 = vcmp.lt.s32.totalorder %v222, 64
  %vm244 = vmand %vm242, %vm243
  %v245 = vsel %vm244, %v220, 0.0
  %246 = vadd.xlane.f32.xlu0 %v245
  %v247 = vpop.xlane.xlu0 %246
  %v248 = vsel %vm244, %v223, 0.0
  %249 = vadd.xlane.f32.xlu0 %v248
  %v250 = vpop.xlane.xlu0 %249
  %v251 = vmul.f32 %v247, 0.03125
  %v252 = vmul.f32 %v250, 0.03125
  %v253 = vmul.f32 %v251, %v251
  %v254 = vsub.f32 %v252, %v253
  %v255 = vmax.f32 %v254, 0.0
  %v256 = vsel %vm244, %v251, %v238
  %v257 = vadd.f32 %v255, 1e-05
  %v258 = vrsqrt.pop %v257
  %v259 = vsel %vm244, %v258, %v241
  %vm260 = vcmp.ge.s32.totalorder %v222, 64
  %vm261 = vcmp.lt.s32.totalorder %v222, 96
  %vm262 = vmand %vm260, %vm261
  %v263 = vsel %vm262, %v220, 0.0
  %264 = vadd.xlane.f32.xlu0 %v263
  %v265 = vpop.xlane.xlu0 %264
  %v266 = vsel %vm262, %v223, 0.0
  %267 = vadd.xlane.f32.xlu0 %v266
  %v268 = vpop.xlane.xlu0 %267
  %v269 = vmul.f32 %v265, 0.03125
  %v270 = vmul.f32 %v268, 0.03125
  %v271 = vmul.f32 %v269, %v269
  %v272 = vsub.f32 %v270, %v271
  %v273 = vmax.f32 %v272, 0.0
  %v274 = vsel %vm262, %v269, %v256
  %v275 = vadd.f32 %v273, 1e-05
  %v276 = vrsqrt.pop %v275
  %v277 = vsel %vm262, %v276, %v259
  %vm278 = vcmp.ge.s32.totalorder %v222, 96
  %vm279 = vcmp.lt.s32.totalorder %v222, 128
  %vm280 = vmand %vm278, %vm279
  %v281 = vsel %vm280, %v220, 0.0
  %282 = vadd.xlane.f32.xlu0 %v281
  %v283 = vpop.xlane.xlu0 %282
  %v284 = vsel %vm280, %v223, 0.0
  %285 = vadd.xlane.f32.xlu0 %v284
  %v286 = vpop.xlane.xlu0 %285
  %v287 = vmul.f32 %v283, 0.03125
  %v288 = vmul.f32 %v286, 0.03125
  %v289 = vmul.f32 %v287, %v287
  %v290 = vsub.f32 %v288, %v289
  %v291 = vmax.f32 %v290, 0.0
  %v292 = vsel %vm280, %v287, %v274
  %v293 = vadd.f32 %v291, 1e-05
  %v294 = vrsqrt.pop %v293
  %v295 = vsel %vm280, %v294, %v277
  %v296 = vsub.f32 %v220, %v292
  %v297 = vmul.f32 %v296, %v295
  %v298 = vpack.c.bf16 %v297, %v297
  %v299 = vld [vmem:[%s5] sm:$0xf]
  %v300 = vld [vmem:[%s5 + $0x4] sm:$0xf]
  %v301 = vld [vmem:[%s5 + $0x8] sm:$0xf]
  %v302 = vld [vmem:[%s5 + $0xc] sm:$0xf]
  %v303 = vld [vmem:[%s5 + $0x10] sm:$0xf]
  %v304 = vld [vmem:[%s5 + $0x14] sm:$0xf]
  %v305 = vld [vmem:[%s5 + $0x18] sm:$0xf]
  %v306 = vld [vmem:[%s5 + $0x1c] sm:$0xf]
  %v307 = vld [vmem:[%s5 + $0x20] sm:$0xf]
  %v308 = vld [vmem:[%s5 + $0x24] sm:$0xf]
  %v309 = vld [vmem:[%s5 + $0x28] sm:$0xf]
  %v310 = vld [vmem:[%s5 + $0x2c] sm:$0xf]
  %v311 = vld [vmem:[%s5 + $0x30] sm:$0xf]
  %v312 = vld [vmem:[%s5 + $0x34] sm:$0xf]
  %v313 = vld [vmem:[%s5 + $0x38] sm:$0xf]
  %v314 = vld [vmem:[%s5 + $0x3c] sm:$0xf]
  %v315 = vld [vmem:[%s6] sm:$0x1]
  %v317 = vlaneseq
  %v318 = vshrl.u32 %v317, 7
  %v319 = vsub.s32 0, %v318
  %v320 = vrot.slane %v315, %v319
  %v338 = vunpack.c.l.b16 %v299
  %v339 = vunpack.c.l.b16 %v300
  %v340 = vunpack.c.l.b16 %v301
  %v341 = vunpack.c.l.b16 %v302
  %v342 = vunpack.c.l.b16 %v303
  %v343 = vunpack.c.l.b16 %v304
  %v344 = vunpack.c.l.b16 %v305
  %v345 = vunpack.c.l.b16 %v306
  %v346 = vunpack.c.l.b16 %v307
  %v347 = vunpack.c.l.b16 %v308
  %v348 = vunpack.c.l.b16 %v309
  %v349 = vunpack.c.l.b16 %v310
  %v350 = vunpack.c.l.b16 %v311
  %v351 = vunpack.c.l.b16 %v312
  %v352 = vunpack.c.l.b16 %v313
  %v353 = vunpack.c.l.b16 %v314
  %v354 = vpack.c.b16 %v339, %v338
  %v355 = vpack.c.b16 %v341, %v340
  %v356 = vpack.c.b16 %v343, %v342
  %v357 = vpack.c.b16 %v345, %v344
  %v358 = vpack.c.b16 %v347, %v346
  %v359 = vpack.c.b16 %v349, %v348
  %v360 = vpack.c.b16 %v351, %v350
  %v361 = vpack.c.b16 %v353, %v352
  %370 = vmatprep.subr.bf16.mxu0 0
  %371 = vmatpush1.bf16.msra.mxu0 %v354
  %372 = vmatprep.subr.bf16.mxu0 0
  %373 = vmatpush1.bf16.msra.mxu0 %v355
  %374 = vmatprep.subr.bf16.mxu0 0
  %375 = vmatpush1.bf16.msra.mxu0 %v356
  %376 = vmatprep.subr.bf16.mxu0 0
  %377 = vmatpush1.bf16.msra.mxu0 %v357
  %378 = vmatprep.subr.bf16.mxu0 0
  %379 = vmatpush1.bf16.msra.mxu0 %v358
  %380 = vmatprep.subr.bf16.mxu0 0
  %381 = vmatpush1.bf16.msra.mxu0 %v359
  %382 = vmatprep.subr.bf16.mxu0 0
  %383 = vmatpush1.bf16.msra.mxu0 %v360
  %384 = vmatprep.subr.bf16.mxu0 0
  %385 = vmatpush1.bf16.msra.mxu0 %v361
  %386 = vmatprep.subr.bf16.mxu0 0
  %387 = vmatpush1.bf16.msra.mxu0 0
  %388 = vmatprep.subr.bf16.mxu0 0
  %389 = vmatpush1.bf16.msra.mxu0 0
  %390 = vmatprep.subr.bf16.mxu0 0
  %391 = vmatpush1.bf16.msra.mxu0 0
  %392 = vmatprep.subr.bf16.mxu0 0
  %393 = vmatpush1.bf16.msra.mxu0 0
  %394 = vmatprep.subr.bf16.mxu0 0
  %395 = vmatpush1.bf16.msra.mxu0 0
  %396 = vmatprep.subr.bf16.mxu0 0
  %397 = vmatpush1.bf16.msra.mxu0 0
  %398 = vmatprep.subr.bf16.mxu0 0
  %399 = vmatpush1.bf16.msra.mxu0 0
  %400 = vmatprep.subr.bf16.mxu0 0
  %401 = vmatpush1.bf16.msra.mxu0 0
  %402 = vmatprep.mubr.bf16.mxu0 0
  %403 = vmatmul.mubr.bf16.gmra.mrb[0].mxu0 %v298
  %v404 = vpop.f32.mrb[0].mxu0
  %v405 = vadd.f32 %v320, %v404
  %v406 = vpop.f32.mrb[0].mxu0
  %v407 = vpop.f32.mrb[0].mxu0
  %v408 = vpop.f32.mrb[0].mxu0
  %409 = vdwg.mxu0
  %v410 = vmax.f32 %v405, 0.0
  %v411 = vpack.c.bf16 %v410, %v410
  %v412 = vld [vmem:[%s7] sm:$0xf]
  %v413 = vld [vmem:[%s7 + $0x4] sm:$0xf]
  %v414 = vld [vmem:[%s7 + $0x8] sm:$0xf]
  %v415 = vld [vmem:[%s7 + $0xc] sm:$0xf]
  %v416 = vld [vmem:[%s7 + $0x10] sm:$0xf]
  %v417 = vld [vmem:[%s7 + $0x14] sm:$0xf]
  %v418 = vld [vmem:[%s7 + $0x18] sm:$0xf]
  %v419 = vld [vmem:[%s7 + $0x1c] sm:$0xf]
  %v420 = vld [vmem:[%s7 + $0x20] sm:$0xf]
  %v421 = vld [vmem:[%s7 + $0x24] sm:$0xf]
  %v422 = vld [vmem:[%s7 + $0x28] sm:$0xf]
  %v423 = vld [vmem:[%s7 + $0x2c] sm:$0xf]
  %v424 = vld [vmem:[%s7 + $0x30] sm:$0xf]
  %v425 = vld [vmem:[%s7 + $0x34] sm:$0xf]
  %v426 = vld [vmem:[%s7 + $0x38] sm:$0xf]
  %v427 = vld [vmem:[%s7 + $0x3c] sm:$0xf]
  %v428 = vld [vmem:[%s8] sm:$0x1]
  %v430 = vlaneseq
  %v431 = vshrl.u32 %v430, 7
  %v432 = vsub.s32 0, %v431
  %v433 = vrot.slane %v428, %v432
  %v451 = vunpack.c.l.b16 %v412
  %v452 = vunpack.c.l.b16 %v413
  %v453 = vunpack.c.l.b16 %v414
  %v454 = vunpack.c.l.b16 %v415
  %v455 = vunpack.c.l.b16 %v416
  %v456 = vunpack.c.l.b16 %v417
  %v457 = vunpack.c.l.b16 %v418
  %v458 = vunpack.c.l.b16 %v419
  %v459 = vunpack.c.l.b16 %v420
  %v460 = vunpack.c.l.b16 %v421
  %v461 = vunpack.c.l.b16 %v422
  %v462 = vunpack.c.l.b16 %v423
  %v463 = vunpack.c.l.b16 %v424
  %v464 = vunpack.c.l.b16 %v425
  %v465 = vunpack.c.l.b16 %v426
  %v466 = vunpack.c.l.b16 %v427
  %v467 = vpack.c.b16 %v452, %v451
  %v468 = vpack.c.b16 %v454, %v453
  %v469 = vpack.c.b16 %v456, %v455
  %v470 = vpack.c.b16 %v458, %v457
  %v471 = vpack.c.b16 %v460, %v459
  %v472 = vpack.c.b16 %v462, %v461
  %v473 = vpack.c.b16 %v464, %v463
  %v474 = vpack.c.b16 %v466, %v465
  %483 = vmatprep.subr.bf16.mxu0 0
  %484 = vmatpush1.bf16.msra.mxu0 %v467
  %485 = vmatprep.subr.bf16.mxu0 0
  %486 = vmatpush1.bf16.msra.mxu0 %v468
  %487 = vmatprep.subr.bf16.mxu0 0
  %488 = vmatpush1.bf16.msra.mxu0 %v469
  %489 = vmatprep.subr.bf16.mxu0 0
  %490 = vmatpush1.bf16.msra.mxu0 %v470
  %491 = vmatprep.subr.bf16.mxu0 0
  %492 = vmatpush1.bf16.msra.mxu0 %v471
  %493 = vmatprep.subr.bf16.mxu0 0
  %494 = vmatpush1.bf16.msra.mxu0 %v472
  %495 = vmatprep.subr.bf16.mxu0 0
  %496 = vmatpush1.bf16.msra.mxu0 %v473
  %497 = vmatprep.subr.bf16.mxu0 0
  %498 = vmatpush1.bf16.msra.mxu0 %v474
  %499 = vmatprep.subr.bf16.mxu0 0
  %500 = vmatpush1.bf16.msra.mxu0 0
  %501 = vmatprep.subr.bf16.mxu0 0
  %502 = vmatpush1.bf16.msra.mxu0 0
  %503 = vmatprep.subr.bf16.mxu0 0
  %504 = vmatpush1.bf16.msra.mxu0 0
  %505 = vmatprep.subr.bf16.mxu0 0
  %506 = vmatpush1.bf16.msra.mxu0 0
  %507 = vmatprep.subr.bf16.mxu0 0
  %508 = vmatpush1.bf16.msra.mxu0 0
  %509 = vmatprep.subr.bf16.mxu0 0
  %510 = vmatpush1.bf16.msra.mxu0 0
  %511 = vmatprep.subr.bf16.mxu0 0
  %512 = vmatpush1.bf16.msra.mxu0 0
  %513 = vmatprep.subr.bf16.mxu0 0
  %514 = vmatpush1.bf16.msra.mxu0 0
  %515 = vmatprep.mubr.bf16.mxu0 0
  %516 = vmatmul.mubr.bf16.gmra.mrb[0].mxu0 %v411
  %v517 = vpop.f32.mrb[0].mxu0
  %v518 = vadd.f32 %v433, %v517
  %v519 = vpop.f32.mrb[0].mxu0
  %v520 = vpop.f32.mrb[0].mxu0
  %v521 = vpop.f32.mrb[0].mxu0
  %522 = vdwg.mxu0
  %v523 = vmax.f32 %v518, 0.0
  %v524 = vpack.c.bf16 %v523, %v523
  %525 = vst [vmem:[%s9] sm:$0xf] %v524
  // Predicated region
  $region38: #{fakenet_forward.1} parent=0 // pred_check
    _
  $region39: #{fakenet_forward.1} parent=0 // pred_check_branch
    %527 = sbr.rel (0) target = $region41
  $region40: #{fakenet_forward.1} parent=0 // pred_region
    _
  $region41: #{fakenet_forward.1} parent=0 // pred_fallthru
    _
  // Predicated region
  $region42: #{fakenet_forward.1} parent=0 // pred_check
    _
  $region43: #{fakenet_forward.1} parent=0 // pred_check_branch
    %529 = sbr.rel (0) target = $region45
  $region44: #{fakenet_forward.1} parent=0 // pred_region
    _
  $region45: #{fakenet_forward.1} parent=0 // pred_fallthru
    _

</llo_original>
